<compile_context>
chip_gen: v5e
topology: v5e:2x2
jax: 0.10.0
libtpu: 0.0.40
codegen_flags: <defaults>
</compile_context>

<pallas_src>
import jax
import jax.numpy as jnp
from jax.experimental import pallas as pl
from jax.experimental.pallas import tpu as pltpu


_LANE = 128
_MAX_HW_TILE = 2048  # lanes per output block; >=512-lane tiles measured ~85% of HBM roofline


def prepare_global_attention_params(params):
    """One-off parameter prep (call at load time, NOT per forward call).

    Takes the module's (wq, bq, wk, bk, wv, bv) with Linear weights stored as
    (in_features, out_features) and biases as (1, out_features); returns the V projection
    pre-transposed so the kernel emits NCHW output directly (D on sublanes, HW on lanes).
    """
    _wq, _bq, _wk, _bk, wv, bv = params
    d = wv.shape[1]
    return wv.T, bv.reshape(d, 1)  # (D, C2), (D, 1)


def global_attention_values(fea_text, prepared_params):
    """v = V(fea_text) as (B, D, 1, 1).

    Prefer this over global_attention() whenever the downstream op can broadcast over
    H*W itself: it eliminates the entire (redundant) B*D*HW HBM writeback.
    """
    wvt, bvt = prepared_params
    B, C2 = fea_text.shape[0], fea_text.shape[1]
    x = fea_text.reshape(B, C2)                       # (B, C2)
    v = jnp.einsum("bc,dc->bd", x, wvt) + bvt[:, 0]   # (B, D)
    return v.reshape(B, wvt.shape[0], 1, 1)


def _pick_hw_tile(hw, max_tile):
    """Largest lane-aligned HW tile <= max_tile (falls back to full HW for tiny maps)."""
    if hw < _LANE:
        return hw                                   # tiny map: single (masked) block
    return min(max_tile, (hw // _LANE) * _LANE)     # multiple of 128 -> unmasked vst


def _global_attention_kernel(text_ref, wvt_ref, bvt_ref, out_ref):
    """Grid = (B, num_hw_tiles); one lane-aligned HW tile of one batch per step.

    text_ref: (B, 1, C2)    all text tokens, resident (constant block index)
    wvt_ref : (D, C2)       V weight pre-transposed, resident
    bvt_ref : (D, 1)        V bias as a column, resident
    out_ref : (1, D, T_HW)  output tile in NCHW layout (HW on the lane axis)
    """
    b = pl.program_id(0)
    x_row = text_ref[b].astype(jnp.float32)                                    # (1, C2)
    # v^T = Wv^T x + bv as a sublane-broadcast multiply + lane reduce (VPU + XLU only:
    # no degenerate 1-lane MXU matmul, no in-kernel transpose).  Recomputed per HW tile;
    # the C2*D multiplies are noise next to the D*T_HW store and the VPU has full slack.
    v_col = (jnp.sum(wvt_ref[...].astype(jnp.float32) * x_row, axis=-1, keepdims=True)
             + bvt_ref[...].astype(jnp.float32))                               # (D, 1)
    # softmax over the single text token == 1  =>  out = v broadcast across all HW lanes.
    out_ref[0] = jnp.broadcast_to(v_col, out_ref.shape[1:]).astype(out_ref.dtype)


def global_attention(fea_video, fea_text, prepared_params, global_attention_dim,
                     *, out_dtype=None, max_hw_tile=_MAX_HW_TILE):
    """fea_video: (B, C1, H, W), fea_text: (B, C2, 1, 1) -> (B, D, H, W)."""
    B, _C1, H, W = fea_video.shape
    assert fea_text.shape[0] == B and fea_text.shape[-2:] == (1, 1), (
        "GlobalAttention shortcut requires a single spatial text token (B, C2, 1, 1); "
        f"got fea_text shape {fea_text.shape}")
    C2 = fea_text.shape[1]
    HW = H * W
    D = global_attention_dim

    wvt, bvt = prepared_params
    assert wvt.shape == (D, C2) and bvt.shape == (D, 1), (wvt.shape, bvt.shape)

    if out_dtype is None:
        # Match what the PyTorch forward would produce; pass jnp.bfloat16 explicitly to
        # halve the HBM writeback on this purely write-bound kernel if the consumer allows.
        out_dtype = jnp.result_type(fea_video.dtype, fea_text.dtype, wvt.dtype)

    t_hw = _pick_hw_tile(HW, max_hw_tile)
    n_hw = pl.cdiv(HW, t_hw)

    # fea_text (B, C2, 1, 1) -> (B, 1, C2): pure reshape, no data movement.
    t_tok = fea_text.reshape(B, 1, C2)

    out = pl.pallas_call(
        _global_attention_kernel,
        out_shape=jax.ShapeDtypeStruct((B, D, HW), out_dtype),
        grid_spec=pltpu.PrefetchScalarGridSpec(
            num_scalar_prefetch=0,
            grid=(B, n_hw),
            in_specs=[
                pl.BlockSpec((B, 1, C2), lambda b, h: (0, 0, 0)),  # text tokens, resident
                pl.BlockSpec((D, C2), lambda b, h: (0, 0)),        # Wv^T, resident
                pl.BlockSpec((D, 1), lambda b, h: (0, 0)),         # bv^T, resident
            ],
            # Lane-aligned HW tiles -> unmasked vst except on a (rare) partial tail block;
            # double-buffered output VMEM = 2 * D * t_hw * 4 bytes regardless of H*W.
            # TODO(synk): sweep pipeline_mode=pl.Buffered(3) here if profiling shows the
            #             writeback DMA exposed between grid steps.
            out_specs=pl.BlockSpec((1, D, t_hw), lambda b, h: (b, 0, h)),
        ),
        compiler_params=pltpu.CompilerParams(
            # Both axes independent: v7x's 2 TensorCores can split B and/or HW tiles.
            dimension_semantics=("parallel", "parallel"),
        ),
    )(t_tok, wvt, bvt)

    # (B, D, HW) -> (B, D, H, W): pure reshape, no transpose / extra HBM round trip.
    return out.reshape(B, D, H, W)


def _reference(fea_video, fea_text, params, D):
    """Pure-JAX reference mirroring the PyTorch forward literally (q/k/softmax included)."""
    wq, bq, wk, bk, wv, bv = params
    B, C1, H, W = fea_video.shape
    _, C2, _, _ = fea_text.shape
    scale = float(D) ** (-0.5)
    xv = fea_video.reshape(B, C1, -1).transpose(0, 2, 1)   # (B, HW, C1)
    xt = fea_text.reshape(B, C2, -1).transpose(0, 2, 1)    # (B, 1, C2)
    q = xv @ wq + bq
    k = xt @ wk + bk
    v = xt @ wv + bv
    att = (q @ k.transpose(0, 2, 1)) * scale
    att = jax.nn.softmax(att, axis=-1)
    out = att @ v
    return out.transpose(0, 2, 1).reshape(B, -1, H, W)


if __name__ == "__main__":
    # Module hyper-parameters (small, consistent with the forward).
    video_feature_dim = 16
    text_dim = 8
    global_attention_dim = 32
    B, H, W = 2, 16, 16                      # HW = 256
    C1 = video_feature_dim + text_dim + 8    # 32 — what fea_video actually carries
    C2 = text_dim
    D = global_attention_dim

    key = jax.random.PRNGKey(0)
    k_fv, k_ft, k_wq, k_bq, k_wk, k_bk, k_wv, k_bv = jax.random.split(key, 8)

    fea_video = jax.random.normal(k_fv, (B, C1, H, W), jnp.float32)
    fea_text = jax.random.normal(k_ft, (B, C2, 1, 1), jnp.float32)

    # Parameters stored as (in_features, out_features); biases as (1, out_features)
    # (equivalent to torch.nn.Linear's x @ W.T + b).
    params = (
        jax.random.normal(k_wq, (C1, D), jnp.float32) * 0.05,
        jax.random.normal(k_bq, (1, D), jnp.float32) * 0.05,
        jax.random.normal(k_wk, (C2, D), jnp.float32) * 0.05,
        jax.random.normal(k_bk, (1, D), jnp.float32) * 0.05,
        jax.random.normal(k_wv, (C2, D), jnp.float32) * 0.05,
        jax.random.normal(k_bv, (1, D), jnp.float32) * 0.05,
    )

    # One-off parameter prep, hoisted out of the per-call hot path.
    prepared = prepare_global_attention_params(params)

    # max_hw_tile=128 exercises the HW grid axis (HW=256 -> 2 lane-dense tiles per batch).
    out = global_attention(fea_video, fea_text, prepared, D, max_hw_tile=128)
    out = jax.block_until_ready(out)

    ref = _reference(fea_video, fea_text, params, D)
    assert out.shape == (B, D, H, W), out.shape
    assert out.dtype == ref.dtype, (out.dtype, ref.dtype)
    assert jnp.allclose(out, ref, atol=1e-4, rtol=1e-4), "mismatch vs reference"

    # Compact path (skips the B*D*HW writeback) agrees with the materialized output.
    v_only = jax.block_until_ready(global_attention_values(fea_text, prepared))
    assert jnp.allclose(v_only[..., 0, 0], out[..., 0, 0], atol=1e-4, rtol=1e-4)

    print("KERNEL_OK")
</pallas_src>

<mosaic_0001>
module attributes {stable_mosaic.version = 11 : i64} {
  func.func @_global_attention_kernel(%arg0: i32, %arg1: i32, %arg2: memref<2x1x8xf32, #tpu.memory_space<vmem>>, %arg3: memref<32x8xf32, #tpu.memory_space<vmem>>, %arg4: memref<32x1xf32, #tpu.memory_space<vmem>>, %arg5: memref<1x32x128xf32, #tpu.memory_space<vmem>>) attributes {dimension_semantics = [#tpu.dimension_semantics<parallel>, #tpu.dimension_semantics<parallel>], iteration_bounds = array<i64: 2, 2>, scalar_prefetch = 0 : i64, scratch_operands = 0 : i64, tpu.core_type = #tpu.core_type<tc>, window_params = [{pipeline_mode = #tpu.pipeline_mode<synchronous>, transform_indices = @transform_0, window_bounds = array<i64: 2, 1, 8>}, {pipeline_mode = #tpu.pipeline_mode<synchronous>, transform_indices = @transform_1, window_bounds = array<i64: 32, 8>}, {pipeline_mode = #tpu.pipeline_mode<synchronous>, transform_indices = @transform_2, window_bounds = array<i64: 32, 1>}, {transform_indices = @transform_3, window_bounds = array<i64: 1, 32, 128>}]} {
    %0 = arith.index_cast %arg0 : i32 to index
    %c0 = arith.constant 0 : index
    %c0_0 = arith.constant 0 : index
    %1 = vector.load %arg2[%0, %c0, %c0_0] : memref<2x1x8xf32, #tpu.memory_space<vmem>>, vector<1x1x8xf32>
    %2 = vector.shape_cast %1 : vector<1x1x8xf32> to vector<1x8xf32>
    %c0_1 = arith.constant 0 : index
    %c0_2 = arith.constant 0 : index
    %3 = vector.load %arg3[%c0_1, %c0_2] : memref<32x8xf32, #tpu.memory_space<vmem>>, vector<32x8xf32>
    %4 = vector.broadcast %2 : vector<1x8xf32> to vector<32x8xf32>
    %5 = arith.mulf %3, %4 : vector<32x8xf32>
    %cst = arith.constant dense<0.000000e+00> : vector<32xf32>
    %6 = vector.multi_reduction <add>, %5, %cst [1] : vector<32x8xf32> to vector<32xf32>
    %7 = vector.shape_cast %6 : vector<32xf32> to vector<32x1xf32>
    %c0_3 = arith.constant 0 : index
    %c0_4 = arith.constant 0 : index
    %8 = vector.load %arg4[%c0_3, %c0_4] : memref<32x1xf32, #tpu.memory_space<vmem>>, vector<32x1xf32>
    %9 = arith.addf %7, %8 : vector<32x1xf32>
    %10 = vector.shape_cast %9 : vector<32x1xf32> to vector<32x1xf32>
    %11 = vector.broadcast %10 : vector<32x1xf32> to vector<32x128xf32>
    %c0_5 = arith.constant 0 : index
    %c0_6 = arith.constant 0 : index
    %c0_7 = arith.constant 0 : index
    %12 = vector.load %arg5[%c0_5, %c0_6, %c0_7] : memref<1x32x128xf32, #tpu.memory_space<vmem>>, vector<1x32x128xf32>
    %13 = vector.shape_cast %12 : vector<1x32x128xf32> to vector<32x128xf32>
    %14 = vector.shape_cast %11 : vector<32x128xf32> to vector<1x32x128xf32>
    tpu.vector_store %arg5[%c0_5, %c0_6, %c0_7], %14 {strides = array<i32>} : memref<1x32x128xf32, #tpu.memory_space<vmem>>, vector<1x32x128xf32>,
    return
  }
  func.func @transform_0(%arg0: i32, %arg1: i32) -> (i32, i32, i32) {
    %c0_i32 = arith.constant 0 : i32
    %c0_i32_0 = arith.constant 0 : i32
    %c0_i32_1 = arith.constant 0 : i32
    %c0_i32_2 = arith.constant 0 : i32
    return %c0_i32, %c0_i32_0, %c0_i32_1 : i32, i32, i32
  }
  func.func @transform_1(%arg0: i32, %arg1: i32) -> (i32, i32) {
    %c0_i32 = arith.constant 0 : i32
    %c0_i32_0 = arith.constant 0 : i32
    %c0_i32_1 = arith.constant 0 : i32
    return %c0_i32, %c0_i32_0 : i32, i32
  }
  func.func @transform_2(%arg0: i32, %arg1: i32) -> (i32, i32) {
    %c0_i32 = arith.constant 0 : i32
    %c0_i32_0 = arith.constant 0 : i32
    %c0_i32_1 = arith.constant 0 : i32
    return %c0_i32, %c0_i32_0 : i32, i32
  }
  func.func @transform_3(%arg0: i32, %arg1: i32) -> (i32, i32, i32) {
    %c0_i32 = arith.constant 0 : i32
    %c0_i32_0 = arith.constant 0 : i32
    return %arg0, %c0_i32, %arg1 : i32, i32, i32
  }
}

</mosaic_0001>

<llo_original>
// kernel: tpu_custom_call.1
$region0: #{tpu_custom_call.1}
  #allocation0 [shape = 'u32[]', space=smem, size = 0x4, offset = 0x4, fixed_abs, tag = 'smem constant byte address 0x4 - core index']
  #allocation1 [shape = 'u32[72,128]{1,0:T(1,128)}', space=vmem, size = 0x9000, scoped, tag = 'internal scratch']
  %s0 = inlined_call_operand.vmem [shape: f32[2,1,8], index: 0, kind: input, shape index: {}]
  %s1 = inlined_call_operand.vmem [shape: f32[32,8], index: 1, kind: input, shape index: {}]
  %s2 = inlined_call_operand.vmem [shape: f32[32,1], index: 2, kind: input, shape index: {}]
  %s3 = inlined_call_operand.hbm [shape: f32[2,32,256], index: 3, kind: output, shape index: {}]
  %s4 = sld [smem:[#allocation0]]
  $region45: #{tpu_custom_call.1} parent=0
    _
  %s6 = ssub.s32 1, %s4
  %s7 = scalar_select 0, %s6, %s4
  $region1: #{tpu_custom_call.1} parent=0
    #allocation2 [shape = 'u8[32768]{0}', space=vmem, size = 0x8000, scoped, tag = 'output window, operand 0']
    #allocation3 [shape = 's32[2]{0}', space=sflag, size = 0x8, scoped, tag = 'scoped memory for tpu_custom_call.1']
    %8 = vsyncpa [#allocation3], 0
    %s9 = scalar_lea.sflag [#allocation3], 1
    %10 = vsyncpa %s9, 0
    loop: start=0, step=1, limit=6
    $region2: #{tpu_custom_call.1} parent=1 // loop_pre_header
      _
    $region3: #{tpu_custom_call.1} parent=1 // loop_header
      %s12 = sphi 0, %s16
      %p13 = scmp.ge.s32.totalorder %s12, 6
      %s19 = sphi 0, %s31
      %s20 = sphi 0, %s27
      %s21 = sphi 0, %s19
      %s22 = sphi 0, %s20
      %s23 = sphi 0, %s21
      %s24 = sphi 0, %s22
      %s32 = sphi 0, %s32
      %s34 = sphi 0, %s32
      %s35 = sphi 0, %s34
      %s49 = sphi 0, %s35
      %s53 = sphi 0, %s53
      %s55 = sphi 0, %s53
      %s56 = sphi 0, %s55
      %s70 = sphi 0, %s56
      %s74 = sphi 0, %s74
      %s76 = sphi 0, %s74
      %s77 = sphi 0, %s76
      %s91 = sphi 0, %s77
      %s99 = sphi 0, %s101
      %s102 = sphi 0, %s99
      %s103 = sphi 0, %s102
      %s119 = sphi 0, %s103
    $region4: #{tpu_custom_call.1} parent=1 // loop_header_branch
      %15 = sbr.rel (%p13) target = $region8
    $region5: #{tpu_custom_call.1} parent=1 // loop_body
      %s17 = ssub.s32 %s12, 1
      %s18 = ssub.s32 %s12, 2
      %s25 = sadd.s32 1, %s20
      %p26 = scmp.ge.s32.totalorder %s25, 2
      %s27 = scalar_select %p26, 0, %s25
      %s28 = sadd.s32 1, %s19
      %s29 = scalar_select %p26, %s28, %s19
      %p30 = scmp.ge.s32.totalorder %s29, 2
      %s31 = scalar_select %p30, 0, %s29
      %s33 = sadd.s32 %s32, 1
      %p36 = scmp.eq.s32.totalorder %s12, 3
      %p37 = scmp.ne.s32.totalorder %s32, %s34
      %p38 = scmp.eq.s32.totalorder %s12, 0
      %p39 = por %p37, %p38
      %p40 = scmp.ne.s32.totalorder %s32, %s34
      %p41 = scmp.eq.s32.totalorder %s17, 3
      %p42 = por %p40, %p41
      %p43 = scmp.ne.s32.totalorder %s34, %s35
      %p44 = scmp.eq.s32.totalorder %s17, 0
      %p45 = por %p43, %p44
      %p46 = scmp.ne.s32.totalorder %s34, %s35
      %p47 = scmp.eq.s32.totalorder %s18, 3
      %p48 = por %p46, %p47
      %p50 = scmp.ne.s32.totalorder %s35, %s49
      %p51 = scmp.eq.s32.totalorder %s18, 0
      %p52 = por %p50, %p51
      %s54 = sadd.s32 %s53, 1
      %p57 = scmp.eq.s32.totalorder %s12, 3
      %p58 = scmp.ne.s32.totalorder %s53, %s55
      %p59 = scmp.eq.s32.totalorder %s12, 0
      %p60 = por %p58, %p59
      %p61 = scmp.ne.s32.totalorder %s53, %s55
      %p62 = scmp.eq.s32.totalorder %s17, 3
      %p63 = por %p61, %p62
      %p64 = scmp.ne.s32.totalorder %s55, %s56
      %p65 = scmp.eq.s32.totalorder %s17, 0
      %p66 = por %p64, %p65
      %p67 = scmp.ne.s32.totalorder %s55, %s56
      %p68 = scmp.eq.s32.totalorder %s18, 3
      %p69 = por %p67, %p68
      %p71 = scmp.ne.s32.totalorder %s56, %s70
      %p72 = scmp.eq.s32.totalorder %s18, 0
      %p73 = por %p71, %p72
      %s75 = sadd.s32 %s74, 1
      %p78 = scmp.eq.s32.totalorder %s12, 3
      %p79 = scmp.ne.s32.totalorder %s74, %s76
      %p80 = scmp.eq.s32.totalorder %s12, 0
      %p81 = por %p79, %p80
      %p82 = scmp.ne.s32.totalorder %s74, %s76
      %p83 = scmp.eq.s32.totalorder %s17, 3
      %p84 = por %p82, %p83
      %p85 = scmp.ne.s32.totalorder %s76, %s77
      %p86 = scmp.eq.s32.totalorder %s17, 0
      %p87 = por %p85, %p86
      %p88 = scmp.ne.s32.totalorder %s76, %s77
      %p89 = scmp.eq.s32.totalorder %s18, 3
      %p90 = por %p88, %p89
      %p92 = scmp.ne.s32.totalorder %s77, %s91
      %p93 = scmp.eq.s32.totalorder %s18, 0
      %p94 = por %p92, %p93
      %s95 = ssub.s32 %s19, %s31
      %s96 = ssub.s32 %s20, %s27
      %s97 = sor.u32 %s95, %s96
      %p98 = scmp.eq.s32.totalorder %s97, 0
      %s100 = sadd.s32 %s99, 1
      %s101 = scalar_select %p98, %s99, %s100
      %p104 = pneg %p98
      %p105 = scmp.eq.s32.totalorder %s12, 3
      %p106 = por %p104, %p105
      %p107 = scmp.ne.s32.totalorder %s99, %s102
      %p108 = scmp.eq.s32.totalorder %s12, 0
      %p109 = por %p107, %p108
      %p110 = scmp.ne.s32.totalorder %s99, %s102
      %p111 = scmp.eq.s32.totalorder %s17, 3
      %p112 = por %p110, %p111
      %p113 = scmp.ne.s32.totalorder %s102, %s103
      %p114 = scmp.eq.s32.totalorder %s17, 0
      %p115 = por %p113, %p114
      %p116 = scmp.ne.s32.totalorder %s102, %s103
      %p117 = scmp.eq.s32.totalorder %s18, 3
      %p118 = por %p116, %p117
      %p120 = scmp.ne.s32.totalorder %s103, %s119
      %p121 = scmp.eq.s32.totalorder %s18, 0
      %p122 = por %p120, %p121
      %p123 = scmp.le.s32.totalorder 1, %s12
      %p124 = scmp.lt.s32.totalorder %s12, 5
      %p125 = pnand %p123, %p124
      %p126 = pneg %p125
      // Predicated region
      $region9: #{tpu_custom_call.1} parent=5 // pred_check
        _
      $region10: #{tpu_custom_call.1} parent=5 // pred_check_branch
        %128 = sbr.rel (%p125) target = $region12
      $region11: #{tpu_custom_call.1} parent=5 // pred_region
        %s129 = ssub.s32 %s12, 1
        // Predicated region
        $region13: #{tpu_custom_call.1} parent=11 // pred_check
          %p130 = pneg %p45
        $region14: #{tpu_custom_call.1} parent=11 // pred_check_branch
          %132 = sbr.rel (%p130) target = $region16
        $region15: #{tpu_custom_call.1} parent=11 // pred_region
          _
        $region16: #{tpu_custom_call.1} parent=11 // pred_fallthru
          _
        // Predicated region
        $region17: #{tpu_custom_call.1} parent=11 // pred_check
          %p133 = pneg %p66
        $region18: #{tpu_custom_call.1} parent=11 // pred_check_branch
          %135 = sbr.rel (%p133) target = $region20
        $region19: #{tpu_custom_call.1} parent=11 // pred_region
          _
        $region20: #{tpu_custom_call.1} parent=11 // pred_fallthru
          _
        // Predicated region
        $region21: #{tpu_custom_call.1} parent=11 // pred_check
          %p136 = pneg %p87
        $region22: #{tpu_custom_call.1} parent=11 // pred_check_branch
          %138 = sbr.rel (%p136) target = $region24
        $region23: #{tpu_custom_call.1} parent=11 // pred_region
          _
        $region24: #{tpu_custom_call.1} parent=11 // pred_fallthru
          _
      $region12: #{tpu_custom_call.1} parent=5 // pred_fallthru
        _
      %p139 = scmp.lt.s32.totalorder %s12, 4
      // Predicated region
      $region25: #{tpu_custom_call.1} parent=5 // pred_check
        %p140 = pneg %p139
      $region26: #{tpu_custom_call.1} parent=5 // pred_check_branch
        %142 = sbr.rel (%p140) target = $region28
      $region27: #{tpu_custom_call.1} parent=5 // pred_region
        _
      $region28: #{tpu_custom_call.1} parent=5 // pred_fallthru
        _
      %p143 = scmp.le.s32.totalorder 1, %s12
      %p144 = scmp.lt.s32.totalorder %s12, 5
      %p145 = pnand %p143, %p144
      %p146 = pneg %p145
      // Predicated region
      $region29: #{tpu_custom_call.1} parent=5 // pred_check
        _
      $region30: #{tpu_custom_call.1} parent=5 // pred_check_branch
        %148 = sbr.rel (%p145) target = $region32
      $region31: #{tpu_custom_call.1} parent=5 // pred_region
        %s149 = ssub.s32 %s12, 1
        %p150 = pneg %p45
        %p151 = pneg %p42
        %p152 = pneg %p66
        %p153 = pneg %p63
        %p154 = pneg %p87
        %p155 = pneg %p84
        %p156 = pneg %p115
        %p157 = pneg %p112
        %s158 = sand.u32 %s102, 1
        %s159 = scalar_lea.sflag [#allocation3], %s158
        %s160 = sand.u32 %s102, 1
        %s161 = smul.addr %s160, 32
        %s162 = scalar_lea.vmem [#allocation2], %s161
        %s163 = scalar_lea.vmem %s0, %s21
        %v164 = vld [vmem:[%s163] sm:$0x1]
        %v165 = vld [vmem:[%s1] sm:$0xff]
        %v166 = vld [vmem:[%s1 + $0x8] sm:$0xff]
        %v167 = vld [vmem:[%s1 + $0x10] sm:$0xff]
        %v168 = vld [vmem:[%s1 + $0x18] sm:$0xff]
        %v170 = vperm.slane %v164, 0
        %v172 = vmul.f32 %v165, %v170
        %v173 = vmul.f32 %v166, %v170
        %v174 = vmul.f32 %v167, %v170
        %v175 = vmul.f32 %v168, %v170
        %vm176 = vcmask 64512
        %v177 = vsel %vm176, %v172, 0.0
        %178 = vadd.xlane.f32.xlu0 %v177
        %v179 = vpop.xlane.xlu0 %178
        %v180 = vsel %vm176, %v173, 0.0
        %181 = vadd.xlane.f32.xlu0 %v180
        %v182 = vpop.xlane.xlu0 %181
        %v183 = vsel %vm176, %v174, 0.0
        %184 = vadd.xlane.f32.xlu0 %v183
        %v185 = vpop.xlane.xlu0 %184
        %v186 = vsel %vm176, %v175, 0.0
        %187 = vadd.xlane.f32.xlu0 %v186
        %v188 = vpop.xlane.xlu0 %187
        %v189 = vld [vmem:[%s2] sm:$0xff]
        %v190 = vld [vmem:[%s2 + $0x8] sm:$0xff]
        %v191 = vld [vmem:[%s2 + $0x10] sm:$0xff]
        %v192 = vld [vmem:[%s2 + $0x18] sm:$0xff]
        %v193 = vadd.f32 %v179, %v189
        %v194 = vadd.f32 %v182, %v190
        %v195 = vadd.f32 %v185, %v191
        %v196 = vadd.f32 %v188, %v192
        %198 = vset.pattern.permute.xlu0 0
        %199 = vperm.xlu0 %198, %v193
        %v200 = vpop.permute.xlu0 %199
        %203 = vset.pattern.permute.xlu0 0
        %204 = vperm.xlu0 %203, %v194
        %v205 = vpop.permute.xlu0 %204
        %208 = vset.pattern.permute.xlu0 0
        %209 = vperm.xlu0 %208, %v195
        %v210 = vpop.permute.xlu0 %209
        %213 = vset.pattern.permute.xlu0 0
        %214 = vperm.xlu0 %213, %v196
        %v215 = vpop.permute.xlu0 %214
        %217 = vst [vmem:[%s162] sm:$0xff] %v200
        %218 = vst [vmem:[%s162 + $0x8] sm:$0xff] %v205
        %219 = vst [vmem:[%s162 + $0x10] sm:$0xff] %v210
        %220 = vst [vmem:[%s162 + $0x18] sm:$0xff] %v215
        %s221 = sand.u32 %s102, 1
        %s222 = scalar_lea.sflag [#allocation3], %s221
        %s223 = sand.u32 %s102, 1
        %s224 = smul.addr %s223, 32
        %s225 = scalar_lea.vmem [#allocation2], %s224
        // Predicated region
        $region33: #{tpu_custom_call.1} parent=31 // pred_check
          %p226 = pneg %p112
        $region34: #{tpu_custom_call.1} parent=31 // pred_check_branch
          %228 = sbr.rel (%p226) target = $region36
        $region35: #{tpu_custom_call.1} parent=31 // pred_region
          %230 = vsyncadd %s222, 0
          %s231 = smul.addr %s21, 8
          %s232 = sadd.s32 %s22, %s231
          %s233 = smul.addr %s232, 8
          %s234 = scalar_lea.hbm %s3, %s233
          %s235 = sshll.u32 %s225, 4
          %s236 = int_to_ptr.vmem [resolvable:$true] %s235
          %s237 = sshll.u32 %s234, 4
          %s238 = int_to_ptr.hbm [resolvable:$true] %s237
          %243 = dma.vmem_to_hbm [thread:$0]  %s236, 512, %s238, %s222, 128, 256, 8
        $region36: #{tpu_custom_call.1} parent=31 // pred_fallthru
          _
      $region32: #{tpu_custom_call.1} parent=5 // pred_fallthru
        _
      %p244 = scmp.le.s32.totalorder 2, %s12
      // Predicated region
      $region37: #{tpu_custom_call.1} parent=5 // pred_check
        %p245 = pneg %p244
      $region38: #{tpu_custom_call.1} parent=5 // pred_check_branch
        %247 = sbr.rel (%p245) target = $region40
      $region39: #{tpu_custom_call.1} parent=5 // pred_region
        %s248 = ssub.s32 %s12, 2
        // Predicated region
        $region41: #{tpu_custom_call.1} parent=39 // pred_check
          %p249 = pneg %p118
        $region42: #{tpu_custom_call.1} parent=39 // pred_check_branch
          %251 = sbr.rel (%p249) target = $region44
        $region43: #{tpu_custom_call.1} parent=39 // pred_region
          %s252 = sand.u32 %s103, 1
          %s253 = scalar_lea.sflag [#allocation3], %s252
          %s254 = sand.u32 %s103, 1
          %s255 = smul.addr %s254, 32
          %s256 = scalar_lea.vmem [#allocation2], %s255
          %258 = dma.done %s253, 512
        $region44: #{tpu_custom_call.1} parent=39 // pred_fallthru
          _
      $region40: #{tpu_custom_call.1} parent=5 // pred_fallthru
        _
    $region6: #{tpu_custom_call.1} parent=1 // loop_footer
      %s16 = sadd.s32 1, %s12
    $region7: #{tpu_custom_call.1} parent=1 // loop_footer_branch
      %11 = sbr.rel target = $region3
    $region8: #{tpu_custom_call.1} parent=1 // loop_exit
      _
    %259 = vsyncpa [#allocation3], 1
    %s260 = scalar_lea.sflag [#allocation3], 1
    %261 = vsyncpa %s260, 1

</llo_original>
